<compile_context>
chip_gen: v6e
topology: v6e:2x2x1
jax: 0.10.0
libtpu: 0.0.40
codegen_flags: <defaults>
</compile_context>

<pallas_src>
import functools

import jax
import jax.numpy as jnp
from jax.experimental import pallas as pl
from jax.experimental.pallas import tpu as pltpu


def gate_pooling_kernel(h_ref, w_ref, b_ref, out_ref, alpha_ref, *,
                        n_modal, in_dim):
    # h_ref:     (TB, n_modal*in_dim)   flattened multimodal embedding tile
    # w_ref:     (n_modal*in_dim, n_modal)  fused per-modal linear weights (resident)
    # b_ref:     (1, n_modal)               fused per-modal linear biases (resident)
    # out_ref:   (TB, in_dim)
    # alpha_ref: (TB, n_modal)
    h = h_ref[...]
    w = w_ref[...]
    b = b_ref[...].astype(jnp.float32)

    # logits[r, m] = h[r, :] @ W[:, m] + b[m]   (MXU matmul, f32 accumulate)
    logits = jnp.dot(h, w, preferred_element_type=jnp.float32) + b
    alpha = jax.nn.sigmoid(logits)                       # (TB, n_modal) f32
    alpha_ref[...] = alpha.astype(alpha_ref.dtype)

    # Gated sum over modalities, unrolled over the small n_modal.  Each modal
    # chunk is a static slice of the SAME bytes already in VMEM for the matmul
    # (h[:, m*in_dim:(m+1)*in_dim] == x[:, m, :]) — no broadcast intermediate,
    # no cross-sublane reduce, just (TB, in_dim) multiply-adds on the VPU.
    acc = alpha[:, 0:1] * h_ref[:, 0:in_dim].astype(jnp.float32)
    for m in range(1, n_modal):
        lo = m * in_dim
        acc = acc + alpha[:, m:m + 1] * h_ref[:, lo:lo + in_dim].astype(jnp.float32)
    out_ref[...] = acc.astype(out_ref.dtype)


def _pick_batch_tile(B, K, itemsize, block_b=1024):
    """Batch tile: multiple of 8 sublanes, capped by a v7x-safe VMEM budget."""
    if B <= 8:
        return B                                   # block == full dim is legal
    bytes_per_row = max(1, K * itemsize)
    vmem_budget = 16 * 1024 * 1024                 # 2x-buffered h tile <= 16 MiB
    max_tb = max(8, (vmem_budget // (2 * bytes_per_row)) // 8 * 8)
    tb = min(block_b, max_tb, ((B + 7) // 8) * 8)  # don't exceed (padded) B
    return max(8, (tb // 8) * 8)


def gate_pooling(x, w, b, *, block_b=1024):
    """Pallas GatePooling forward.

    Args:
      x: (B, n_modal, in_dim) float32 (or bf16) multimodal embedding
      w: (n_modal*in_dim, n_modal) -- column m is fcs[str(m)].weight
      b: (n_modal,) -- entry m is fcs[str(m)].bias
    Returns:
      out:   (B, in_dim)  gated sum of modal embeddings
      alpha: (B, n_modal) predicted gate weights
    """
    B, n_modal, in_dim = x.shape
    K = n_modal * in_dim
    # Single flattened view of the input -- the ONLY copy of x sent to HBM/VMEM.
    h = x.reshape(B, K)                            # glue reshape (PyTorch x.view)
    b2 = b.reshape(1, n_modal)

    # TODO(synk): if K (= n_modal*in_dim) is not a multiple of 128, pad the
    # fused W along K for lane-aligned MXU feeds (K = 128 in this config).

    tb = _pick_batch_tile(B, K, jnp.dtype(x.dtype).itemsize, block_b)
    grid = (pl.cdiv(B, tb),)

    itemsize_in = jnp.dtype(x.dtype).itemsize
    cost = pl.CostEstimate(
        flops=2 * B * K * n_modal + 2 * B * K,                 # matmul + gated MAC
        transcendentals=B * n_modal,                           # sigmoid
        bytes_accessed=(h.size + w.size + b2.size) * itemsize_in
        + (B * in_dim + B * n_modal) * itemsize_in,
    )

    kernel = functools.partial(gate_pooling_kernel, n_modal=n_modal, in_dim=in_dim)

    out_shape = (
        jax.ShapeDtypeStruct((B, in_dim), x.dtype),
        jax.ShapeDtypeStruct((B, n_modal), x.dtype),
    )
    grid_spec = pltpu.PrefetchScalarGridSpec(
        num_scalar_prefetch=0,
        grid=grid,
        in_specs=[
            # Batch-tiled input (double-buffered by the Pallas pipeline).
            pl.BlockSpec((tb, K), lambda i: (i, 0)),
            # Weights / bias: same block index every step -> stay VMEM-resident.
            pl.BlockSpec((K, n_modal), lambda i: (0, 0)),
            pl.BlockSpec((1, n_modal), lambda i: (0, 0)),
        ],
        out_specs=[
            pl.BlockSpec((tb, in_dim), lambda i: (i, 0)),
            pl.BlockSpec((tb, n_modal), lambda i: (i, 0)),
        ],
    )
    return pl.pallas_call(
        kernel,
        out_shape=out_shape,
        grid_spec=grid_spec,
        compiler_params=pltpu.CompilerParams(
            # Batch tiles are independent: lets Mosaic shard across both
            # TensorCores on v7x; harmless on single-TC v5e/v6e.
            dimension_semantics=("parallel",)),
        cost_estimate=cost,
    )(h, w, b2)


def gate_pooling_ref(x, w, b):
    """Pure-JAX reference matching the PyTorch forward."""
    B, n_modal, in_dim = x.shape
    h = x.reshape(B, n_modal * in_dim)
    alpha = jax.nn.sigmoid(h @ w + b[None, :])           # (B, n_modal)
    out = jnp.einsum("bm,bmd->bd", alpha, x)             # bmm(alpha.unsqueeze(1), x)
    return out, alpha


if __name__ == "__main__":
    B, n_modal, in_dim = 2, 4, 32

    key = jax.random.PRNGKey(0)
    kx, kw, kb = jax.random.split(key, 3)

    x = jax.random.normal(kx, (B, n_modal, in_dim), dtype=jnp.float32)

    # Deterministic parameter init (stands in for nn.Linear's init):
    # each fcs[str(m)] is Linear(in_dim*n_modal, 1); fuse as column m of W.
    fan_in = in_dim * n_modal
    bound = 1.0 / (fan_in ** 0.5)
    w = jax.random.uniform(kw, (fan_in, n_modal), jnp.float32, -bound, bound)
    b = jax.random.uniform(kb, (n_modal,), jnp.float32, -bound, bound)

    out, alpha = gate_pooling(x, w, b)
    out = jax.block_until_ready(out)
    alpha = jax.block_until_ready(alpha)

    out_ref, alpha_ref = gate_pooling_ref(x, w, b)
    assert out.shape == (B, in_dim)
    assert alpha.shape == (B, n_modal)
    assert jnp.allclose(out, out_ref, atol=1e-5, rtol=1e-5)
    assert jnp.allclose(alpha, alpha_ref, atol=1e-5, rtol=1e-5)

    print("KERNEL_OK")
</pallas_src>

<mosaic_0001>
module attributes {stable_mosaic.version = 11 : i64} {
  func.func @gate_pooling_kernel(%arg0: i32, %arg1: memref<2x128xf32, #tpu.memory_space<vmem>>, %arg2: memref<128x4xf32, #tpu.memory_space<vmem>>, %arg3: memref<1x4xf32, #tpu.memory_space<vmem>>, %arg4: memref<2x32xf32, #tpu.memory_space<vmem>>, %arg5: memref<2x4xf32, #tpu.memory_space<vmem>>) attributes {dimension_semantics = [#tpu.dimension_semantics<parallel>], iteration_bounds = array<i64: 1>, scalar_prefetch = 0 : i64, scratch_operands = 0 : i64, tpu.core_type = #tpu.core_type<tc>, window_params = [{transform_indices = @transform_0, window_bounds = array<i64: 2, 128>}, {pipeline_mode = #tpu.pipeline_mode<synchronous>, transform_indices = @transform_1, window_bounds = array<i64: 128, 4>}, {pipeline_mode = #tpu.pipeline_mode<synchronous>, transform_indices = @transform_2, window_bounds = array<i64: 1, 4>}, {transform_indices = @transform_3, window_bounds = array<i64: 2, 32>}, {transform_indices = @transform_4, window_bounds = array<i64: 2, 4>}]} {
    %c0 = arith.constant 0 : index
    %c0_0 = arith.constant 0 : index
    %0 = vector.load %arg1[%c0, %c0_0] : memref<2x128xf32, #tpu.memory_space<vmem>>, vector<2x128xf32>
    %c0_1 = arith.constant 0 : index
    %c0_2 = arith.constant 0 : index
    %1 = vector.load %arg2[%c0_1, %c0_2] : memref<128x4xf32, #tpu.memory_space<vmem>>, vector<128x4xf32>
    %c0_3 = arith.constant 0 : index
    %c0_4 = arith.constant 0 : index
    %2 = vector.load %arg3[%c0_3, %c0_4] : memref<1x4xf32, #tpu.memory_space<vmem>>, vector<1x4xf32>
    %cst = arith.constant dense<0.000000e+00> : vector<2x4xf32>
    %3 = tpu.matmul %0, %1, %cst {dimension_numbers = #tpu.dot_dimension_numbers<[1], [0], [0], [1], [0, 0, 1, 1], [], []>} : vector<2x128xf32>, vector<128x4xf32>, vector<2x4xf32> -> vector<2x4xf32>
    %4 = vector.broadcast %2 : vector<1x4xf32> to vector<2x4xf32>
    %5 = arith.addf %3, %4 : vector<2x4xf32>
    %6 = arith.negf %5 : vector<2x4xf32>
    %7 = math.exp %6 : vector<2x4xf32>
    %cst_5 = arith.constant 1.000000e+00 : f32
    %8 = vector.broadcast %cst_5 : f32 to vector<2x4xf32>
    %9 = arith.addf %8, %7 : vector<2x4xf32>
    %10 = arith.divf %8, %9 : vector<2x4xf32>
    %c0_6 = arith.constant 0 : index
    %c0_7 = arith.constant 0 : index
    %11 = vector.load %arg5[%c0_6, %c0_7] : memref<2x4xf32, #tpu.memory_space<vmem>>, vector<2x4xf32>
    tpu.vector_store %arg5[%c0_6, %c0_7], %10 {strides = array<i32>} : memref<2x4xf32, #tpu.memory_space<vmem>>, vector<2x4xf32>,
    %12 = vector.extract_strided_slice %10 {offsets = [0, 0], sizes = [2, 1], strides = [1, 1]} : vector<2x4xf32> to vector<2x1xf32>
    %c0_8 = arith.constant 0 : index
    %c0_9 = arith.constant 0 : index
    %13 = vector.load %arg1[%c0_8, %c0_9] : memref<2x128xf32, #tpu.memory_space<vmem>>, vector<2x32xf32>
    %14 = vector.broadcast %12 : vector<2x1xf32> to vector<2x32xf32>
    %15 = arith.mulf %14, %13 : vector<2x32xf32>
    %16 = vector.extract_strided_slice %10 {offsets = [0, 1], sizes = [2, 1], strides = [1, 1]} : vector<2x4xf32> to vector<2x1xf32>
    %c0_10 = arith.constant 0 : index
    %c32 = arith.constant 32 : index
    %17 = vector.load %arg1[%c0_10, %c32] : memref<2x128xf32, #tpu.memory_space<vmem>>, vector<2x32xf32>
    %18 = vector.broadcast %16 : vector<2x1xf32> to vector<2x32xf32>
    %19 = arith.mulf %18, %17 : vector<2x32xf32>
    %20 = arith.addf %15, %19 : vector<2x32xf32>
    %21 = vector.extract_strided_slice %10 {offsets = [0, 2], sizes = [2, 1], strides = [1, 1]} : vector<2x4xf32> to vector<2x1xf32>
    %c0_11 = arith.constant 0 : index
    %c64 = arith.constant 64 : index
    %22 = vector.load %arg1[%c0_11, %c64] : memref<2x128xf32, #tpu.memory_space<vmem>>, vector<2x32xf32>
    %23 = vector.broadcast %21 : vector<2x1xf32> to vector<2x32xf32>
    %24 = arith.mulf %23, %22 : vector<2x32xf32>
    %25 = arith.addf %20, %24 : vector<2x32xf32>
    %26 = vector.extract_strided_slice %10 {offsets = [0, 3], sizes = [2, 1], strides = [1, 1]} : vector<2x4xf32> to vector<2x1xf32>
    %c0_12 = arith.constant 0 : index
    %c96 = arith.constant 96 : index
    %27 = vector.load %arg1[%c0_12, %c96] : memref<2x128xf32, #tpu.memory_space<vmem>>, vector<2x32xf32>
    %28 = vector.broadcast %26 : vector<2x1xf32> to vector<2x32xf32>
    %29 = arith.mulf %28, %27 : vector<2x32xf32>
    %30 = arith.addf %25, %29 : vector<2x32xf32>
    %c0_13 = arith.constant 0 : index
    %c0_14 = arith.constant 0 : index
    %31 = vector.load %arg4[%c0_13, %c0_14] : memref<2x32xf32, #tpu.memory_space<vmem>>, vector<2x32xf32>
    tpu.vector_store %arg4[%c0_13, %c0_14], %30 {strides = array<i32>} : memref<2x32xf32, #tpu.memory_space<vmem>>, vector<2x32xf32>,
    return
  }
  func.func @transform_0(%arg0: i32) -> (i32, i32) {
    %c0_i32 = arith.constant 0 : i32
    %c0_i32_0 = arith.constant 0 : i32
    return %arg0, %c0_i32 : i32, i32
  }
  func.func @transform_1(%arg0: i32) -> (i32, i32) {
    %c0_i32 = arith.constant 0 : i32
    %c0_i32_0 = arith.constant 0 : i32
    %c0_i32_1 = arith.constant 0 : i32
    return %c0_i32, %c0_i32_0 : i32, i32
  }
  func.func @transform_2(%arg0: i32) -> (i32, i32) {
    %c0_i32 = arith.constant 0 : i32
    %c0_i32_0 = arith.constant 0 : i32
    %c0_i32_1 = arith.constant 0 : i32
    return %c0_i32, %c0_i32_0 : i32, i32
  }
  func.func @transform_3(%arg0: i32) -> (i32, i32) {
    %c0_i32 = arith.constant 0 : i32
    %c0_i32_0 = arith.constant 0 : i32
    return %arg0, %c0_i32 : i32, i32
  }
  func.func @transform_4(%arg0: i32) -> (i32, i32) {
    %c0_i32 = arith.constant 0 : i32
    %c0_i32_0 = arith.constant 0 : i32
    return %arg0, %c0_i32 : i32, i32
  }
}

</mosaic_0001>

<llo_original>
// kernel: tpu_custom_call.1
$region0: #{tpu_custom_call.1}
  #allocation0 [shape = 'u32[]', space=smem, size = 0x4, offset = 0x4, fixed_abs, tag = 'smem constant byte address 0x4 - core index']
  #allocation1 [shape = 'u32[144,128]{1,0:T(1,128)}', space=vmem, size = 0x12000, scoped, tag = 'internal scratch']
  %s0 = inlined_call_operand.vmem [shape: f32[2,128], index: 0, kind: input, shape index: {}]
  %s1 = inlined_call_operand.vmem [shape: f32[128,4], index: 1, kind: input, shape index: {}]
  %s2 = inlined_call_operand.vmem [shape: f32[1,4], index: 2, kind: input, shape index: {}]
  %s3 = inlined_call_operand.hbm [shape: f32[2,32], index: 3, kind: output, shape index: {0}]
  %s4 = inlined_call_operand.hbm [shape: f32[2,4], index: 4, kind: output, shape index: {1}]
  %5 = xla_tuple %s3, %s4
  %s6 = sld [smem:[#allocation0]]
  $region30: #{tpu_custom_call.1} parent=0
    _
  %s8 = ssub.s32 1, %s6
  %s9 = scalar_select 0, %s8, %s6
  $region1: #{tpu_custom_call.1} parent=0
    #allocation2 [shape = 'u8[1024]{0}', space=vmem, size = 0x400, scoped, tag = 'output window, operand 0, single buffered']
    #allocation3 [shape = 's32[1]{0}', space=sflag, size = 0x4, scoped, tag = 'scoped memory for tpu_custom_call.1']
    #allocation4 [shape = 'u8[1024]{0}', space=vmem, size = 0x400, scoped, tag = 'output window, operand 1, single buffered']
    #allocation5 [shape = 's32[1]{0}', space=sflag, size = 0x4, scoped, tag = 'scoped memory for tpu_custom_call.1']
    %10 = vsyncpa [#allocation3], 0
    %11 = vsyncpa [#allocation5], 0
    // Predicated region
    $region2: #{tpu_custom_call.1} parent=1 // pred_check
      _
    $region3: #{tpu_custom_call.1} parent=1 // pred_check_branch
      %13 = sbr.rel (0) target = $region5
    $region4: #{tpu_custom_call.1} parent=1 // pred_region
      _
    $region5: #{tpu_custom_call.1} parent=1 // pred_fallthru
      _
    // Predicated region
    $region6: #{tpu_custom_call.1} parent=1 // pred_check
      _
    $region7: #{tpu_custom_call.1} parent=1 // pred_check_branch
      %15 = sbr.rel (0) target = $region9
    $region8: #{tpu_custom_call.1} parent=1 // pred_region
      _
    $region9: #{tpu_custom_call.1} parent=1 // pred_fallthru
      _
    // Predicated region
    $region10: #{tpu_custom_call.1} parent=1 // pred_check
      _
    $region11: #{tpu_custom_call.1} parent=1 // pred_check_branch
      %17 = sbr.rel (0) target = $region13
    $region12: #{tpu_custom_call.1} parent=1 // pred_region
      _
    $region13: #{tpu_custom_call.1} parent=1 // pred_fallthru
      _
    %v18 = vld [vmem:[%s0] sm:$0x3]
    %v19 = vld [vmem:[%s1] sm:$0xff]
    %v20 = vld [vmem:[%s1 + $0x8] sm:$0xff]
    %v21 = vld [vmem:[%s1 + $0x10] sm:$0xff]
    %v22 = vld [vmem:[%s1 + $0x18] sm:$0xff]
    %v23 = vld [vmem:[%s1 + $0x20] sm:$0xff]
    %v24 = vld [vmem:[%s1 + $0x28] sm:$0xff]
    %v25 = vld [vmem:[%s1 + $0x30] sm:$0xff]
    %v26 = vld [vmem:[%s1 + $0x38] sm:$0xff]
    %v27 = vld [vmem:[%s1 + $0x40] sm:$0xff]
    %v28 = vld [vmem:[%s1 + $0x48] sm:$0xff]
    %v29 = vld [vmem:[%s1 + $0x50] sm:$0xff]
    %v30 = vld [vmem:[%s1 + $0x58] sm:$0xff]
    %v31 = vld [vmem:[%s1 + $0x60] sm:$0xff]
    %v32 = vld [vmem:[%s1 + $0x68] sm:$0xff]
    %v33 = vld [vmem:[%s1 + $0x70] sm:$0xff]
    %v34 = vld [vmem:[%s1 + $0x78] sm:$0xff]
    %v35 = vld [vmem:[%s2] sm:$0x1]
    %v37 = vlaneseq
    %v38 = vshrl.u32 %v37, 7
    %v39 = vsub.s32 0, %v38
    %v40 = vrot.slane %v35, %v39
    %42 = vmatprep.subr.mxu0 0.0
    %43 = vmatpush1.msra.mxu0 %v34
    %44 = vmatprep.subr.mxu0 0.0
    %45 = vmatpush1.msra.mxu0 %v33
    %46 = vmatprep.subr.mxu0 0.0
    %47 = vmatpush1.msra.mxu0 %v32
    %48 = vmatprep.subr.mxu0 0.0
    %49 = vmatpush1.msra.mxu0 %v31
    %50 = vmatprep.subr.mxu0 0.0
    %51 = vmatpush1.msra.mxu0 %v30
    %52 = vmatprep.subr.mxu0 0.0
    %53 = vmatpush1.msra.mxu0 %v29
    %54 = vmatprep.subr.mxu0 0.0
    %55 = vmatpush1.msra.mxu0 %v28
    %56 = vmatprep.subr.mxu0 0.0
    %57 = vmatpush1.msra.mxu0 %v27
    %58 = vmatprep.subr.mxu0 0.0
    %59 = vmatpush1.msra.mxu0 %v26
    %60 = vmatprep.subr.mxu0 0.0
    %61 = vmatpush1.msra.mxu0 %v25
    %62 = vmatprep.subr.mxu0 0.0
    %63 = vmatpush1.msra.mxu0 %v24
    %64 = vmatprep.subr.mxu0 0.0
    %65 = vmatpush1.msra.mxu0 %v23
    %66 = vmatprep.subr.mxu0 0.0
    %67 = vmatpush1.msra.mxu0 %v22
    %68 = vmatprep.subr.mxu0 0.0
    %69 = vmatpush1.msra.mxu0 %v21
    %70 = vmatprep.subr.mxu0 0.0
    %71 = vmatpush1.msra.mxu0 %v20
    %72 = vmatprep.subr.mxu0 0.0
    %73 = vmatpush1.msra.mxu0 %v19
    %74 = vmatprep.subr.mxu0 0.0
    %75 = vmatpush2.msra.mxu0 0.0
    %76 = vmatprep.subr.mxu0 0.0
    %77 = vmatpush2.msra.mxu0 0.0
    %78 = vmatprep.subr.mxu0 0.0
    %79 = vmatpush2.msra.mxu0 0.0
    %80 = vmatprep.subr.mxu0 0.0
    %81 = vmatpush2.msra.mxu0 0.0
    %82 = vmatprep.subr.mxu0 0.0
    %83 = vmatpush2.msra.mxu0 0.0
    %84 = vmatprep.subr.mxu0 0.0
    %85 = vmatpush2.msra.mxu0 0.0
    %86 = vmatprep.subr.mxu0 0.0
    %87 = vmatpush2.msra.mxu0 0.0
    %88 = vmatprep.subr.mxu0 0.0
    %89 = vmatpush2.msra.mxu0 0.0
    %90 = vmatprep.subr.mxu0 0.0
    %91 = vmatpush2.msra.mxu0 0.0
    %92 = vmatprep.subr.mxu0 0.0
    %93 = vmatpush2.msra.mxu0 0.0
    %94 = vmatprep.subr.mxu0 0.0
    %95 = vmatpush2.msra.mxu0 0.0
    %96 = vmatprep.subr.mxu0 0.0
    %97 = vmatpush2.msra.mxu0 0.0
    %98 = vmatprep.subr.mxu0 0.0
    %99 = vmatpush2.msra.mxu0 0.0
    %100 = vmatprep.subr.mxu0 0.0
    %101 = vmatpush2.msra.mxu0 0.0
    %102 = vmatprep.subr.mxu0 0.0
    %103 = vmatpush2.msra.mxu0 0.0
    %104 = vmatprep.subr.mxu0 0.0
    %105 = vmatpush2.msra.mxu0 0.0
    %106 = vmatprep.mubr.f32.mxu0 0.0
    %107 = vmatmul.mubr.f32.gmra.mxu0 %v18
    %v108 = vpop.f32.mrf.mxu0
    %v109 = vadd.f32 %v40, %v108
    %v110 = vpop.f32.mrf.mxu0
    %111 = vdwg.mxu0
    %v112 = vxor.u32 %v109, 2147483648
    %v113 = vmul.f32 %v112, 1.442695
    %v114 = vpow.pop %v113
    %v115 = vadd.f32 %v114, 1.0
    %v116 = vrcp.pop %v115
    %v117 = vmul.f32 1.0, %v116
    %vm118 = vcmask 25600
    %119 = vst.msk [vmem:[#allocation4] sm:$0x3] %vm118, %v117
    %v120 = vld [vmem:[%s0] sm:$0x3]
    %122 = vset.pattern.permute.xlu0 0
    %123 = vperm.xlu0 %122, %v117
    %v124 = vpop.permute.xlu0 %123
    %v126 = vmul.f32 %v124, %v120
    %127 = vset.pattern.permute.xlu0 1
    %128 = vperm.xlu0 %127, %v117
    %v129 = vpop.permute.xlu0 %128
    %v131 = vmul.f32 %v129, %v120
    %133 = vrot.lane.b32.xlu0 %v131, 96
    %v134 = vpop.permute.xlu0 %133
    %v136 = vadd.f32 %v126, %v134
    %137 = vset.pattern.permute.xlu0 2
    %138 = vperm.xlu0 %137, %v117
    %v139 = vpop.permute.xlu0 %138
    %v141 = vmul.f32 %v139, %v120
    %143 = vrot.lane.b32.xlu0 %v141, 64
    %v144 = vpop.permute.xlu0 %143
    %v146 = vadd.f32 %v136, %v144
    %147 = vset.pattern.permute.xlu0 3
    %148 = vperm.xlu0 %147, %v117
    %v149 = vpop.permute.xlu0 %148
    %v151 = vmul.f32 %v149, %v120
    %153 = vrot.lane.b32.xlu0 %v151, 32
    %v154 = vpop.permute.xlu0 %153
    %v156 = vadd.f32 %v146, %v154
    %vm157 = vcmask 254976
    %158 = vst.msk [vmem:[#allocation2] sm:$0x3] %vm157, %v156
    // Predicated region
    $region14: #{tpu_custom_call.1} parent=1 // pred_check
      _
    $region15: #{tpu_custom_call.1} parent=1 // pred_check_branch
      %160 = sbr.rel (0) target = $region17
    $region16: #{tpu_custom_call.1} parent=1 // pred_region
      %s162 = ssub.s32 32, 32
      %163 = vsyncadd [#allocation3], %s162
      %s165 = sshll.u32 [#allocation2], 4
      %s166 = int_to_ptr.vmem [resolvable:$true] %s165
      %168 = dma.vmem_to_hbm [thread:$0]  %s166, 32, %s3, [#allocation3]
    $region17: #{tpu_custom_call.1} parent=1 // pred_fallthru
      _
    // Predicated region
    $region18: #{tpu_custom_call.1} parent=1 // pred_check
      _
    $region19: #{tpu_custom_call.1} parent=1 // pred_check_branch
      %170 = sbr.rel (0) target = $region21
    $region20: #{tpu_custom_call.1} parent=1 // pred_region
      %s172 = ssub.s32 32, 32
      %173 = vsyncadd [#allocation5], %s172
      %s175 = sshll.u32 [#allocation4], 4
      %s176 = int_to_ptr.vmem [resolvable:$true] %s175
      %178 = dma.vmem_to_hbm [thread:$0]  %s176, 32, %s4, [#allocation5]
    $region21: #{tpu_custom_call.1} parent=1 // pred_fallthru
      _
    // Predicated region
    $region22: #{tpu_custom_call.1} parent=1 // pred_check
      _
    $region23: #{tpu_custom_call.1} parent=1 // pred_check_branch
      %180 = sbr.rel (0) target = $region25
    $region24: #{tpu_custom_call.1} parent=1 // pred_region
      %181 = dma.done [#allocation3], 32
    $region25: #{tpu_custom_call.1} parent=1 // pred_fallthru
      _
    // Predicated region
    $region26: #{tpu_custom_call.1} parent=1 // pred_check
      _
    $region27: #{tpu_custom_call.1} parent=1 // pred_check_branch
      %183 = sbr.rel (0) target = $region29
    $region28: #{tpu_custom_call.1} parent=1 // pred_region
      %184 = dma.done [#allocation5], 32
    $region29: #{tpu_custom_call.1} parent=1 // pred_fallthru
      _
    %185 = vsyncpa [#allocation3], 1
    %186 = vsyncpa [#allocation5], 1

</llo_original>
